<compile_context>
chip_gen: v5e
topology: v5e:2x2
jax: 0.10.0
libtpu: 0.0.40
codegen_flags: <defaults>
</compile_context>

<pallas_src>
import jax
import jax.numpy as jnp
from jax import lax
from jax.experimental import pallas as pl
from jax.experimental.pallas import tpu as pltpu


def _attention_pooling_kernel(
    x_ref,        # (block_b, S, H) float32
    mask_ref,     # (block_b, S)    int32
    w1_ref,       # (H, H)          bfloat16 (VMEM-resident across the grid)
    b1_ref,       # (1, H)          float32
    ln_w_ref,     # (1, H)          float32
    ln_b_ref,     # (1, H)          float32
    w2_ref,       # (1, H)          float32  (Linear(H,1) weight as a row)
    b2_ref,       # (1, 1)          float32  (SMEM scalar)
    out_ref,      # (block_b, H)    float32
):
    bt, seq, hid = x_ref.shape
    x3 = x_ref[...]                                    # (bt, S, H) f32
    x2 = x3.reshape(bt * seq, hid)                     # fuse batch+seq for the MXU

    # --- Linear(H, H): bf16 MXU matmul, f32 accumulate ---
    h = jnp.dot(x2.astype(jnp.bfloat16), w1_ref[...],
                preferred_element_type=jnp.float32) + b1_ref[...]

    # --- LayerNorm(H) (eps = 1e-5, elementwise affine) ---
    mean = jnp.mean(h, axis=-1, keepdims=True)
    centered = h - mean
    var = jnp.mean(centered * centered, axis=-1, keepdims=True)
    h = centered * lax.rsqrt(var + 1e-5)
    h = h * ln_w_ref[...] + ln_b_ref[...]

    # --- GELU (exact, erf-based — matches nn.GELU default) ---
    h = 0.5 * h * (1.0 + lax.erf(h * 0.7071067811865476))

    # --- Linear(H, 1): VPU multiply + lane reduce (no N=1 MXU matmul) ---
    w2r = w2_ref[...].reshape(1, 1, hid)
    logits = jnp.sum(h.reshape(bt, seq, hid) * w2r, axis=-1) + b2_ref[0, 0]  # (bt, S)

    # --- masked softmax over the sequence dimension ---
    logits = jnp.where(mask_ref[...] == 0, -jnp.inf, logits)
    m = jnp.max(logits, axis=-1, keepdims=True)
    e = jnp.exp(logits - m)
    denom = jnp.sum(e, axis=-1, keepdims=True)
    p = e * pl.reciprocal(denom, approx=True)          # (bt, S)

    # --- weighted sum over S as a batched MXU matmul: (bt,1,S) @ (bt,S,H) ---
    pooled = jnp.einsum('bqs,bsh->bqh', p[:, None, :], x3,
                        preferred_element_type=jnp.float32)   # (bt, 1, H)
    out_ref[...] = pooled[:, 0, :].astype(out_ref.dtype)


def _choose_block_b(B, S, H, budget_bytes=8 * 1024 * 1024):
    """Largest divisor of B that keeps every block (8,128)-legal and within budget."""
    cands = [d for d in range(1, B + 1)
             if B % d == 0 and (d == B or d % 8 == 0)]
    cands.sort(reverse=True)

    def est(bt):
        x_blk = 2 * bt * S * H * 4        # double-buffered f32 x block
        msk = 2 * bt * S * 4              # double-buffered mask block
        tmps = 3 * bt * S * H * 4         # h / gelu / broadcast temporaries
        return x_blk + msk + tmps

    for bt in cands:
        if est(bt) <= budget_bytes:
            return bt
    return cands[-1]


def attention_pooling(last_hidden_state, attention_mask, params, *, block_b=None):
    """last_hidden_state: (B, S, H) f32, attention_mask: (B, S) -> (B, H) f32."""
    B, S, H = last_hidden_state.shape
    w1, b1, ln_w, ln_b, w2, b2 = params

    if block_b is None:
        block_b = _choose_block_b(B, S, H)
    assert B % block_b == 0, f"block_b={block_b} must divide B={B}"

    x = last_hidden_state.astype(jnp.float32)
    mask = attention_mask.astype(jnp.int32)
    w1_bf16 = w1.astype(jnp.bfloat16)

    # VMEM budget: double-buffered x block + resident bf16 w1 + f32 temporaries.
    x_block_bytes = block_b * S * H * 4
    est = (2 * x_block_bytes            # pipelined x input
           + 2 * H * H * 2              # bf16 w1 (buffered)
           + 4 * x_block_bytes          # kernel temporaries
           + 2 * 1024 * 1024)           # headroom (params, mask, output)
    vmem_limit = int(min(max(est, 16 * 1024 * 1024), 48 * 1024 * 1024))

    grid_spec = pltpu.PrefetchScalarGridSpec(
        num_scalar_prefetch=0,
        grid=(B // block_b,),
        in_specs=[
            pl.BlockSpec((block_b, S, H), lambda b: (b, 0, 0)),       # x
            pl.BlockSpec((block_b, S), lambda b: (b, 0)),             # mask
            pl.BlockSpec((H, H), lambda b: (0, 0)),                   # w1 (bf16, resident)
            pl.BlockSpec((1, H), lambda b: (0, 0)),                   # b1
            pl.BlockSpec((1, H), lambda b: (0, 0)),                   # ln_w
            pl.BlockSpec((1, H), lambda b: (0, 0)),                   # ln_b
            pl.BlockSpec((1, H), lambda b: (0, 0)),                   # w2 row
            pl.BlockSpec(memory_space=pltpu.MemorySpace.SMEM),        # b2 scalar
        ],
        out_specs=pl.BlockSpec((block_b, H), lambda b: (b, 0)),
    )

    return pl.pallas_call(
        _attention_pooling_kernel,
        out_shape=jax.ShapeDtypeStruct((B, H), jnp.float32),
        grid_spec=grid_spec,
        compiler_params=pltpu.CompilerParams(
            dimension_semantics=("parallel",),
            vmem_limit_bytes=vmem_limit),
    )(x, mask, w1_bf16, b1.reshape(1, H), ln_w.reshape(1, H),
      ln_b.reshape(1, H), w2.reshape(1, H), b2.reshape(1, 1))


def init_params(key, hidden_size):
    """Deterministic synthetic init matching nn.Linear / nn.LayerNorm shapes."""
    k1, k2, k3, k4 = jax.random.split(key, 4)
    bound = 1.0 / jnp.sqrt(hidden_size)
    # Linear(H, H): weight stored already transposed for x @ W
    w1 = jax.random.uniform(k1, (hidden_size, hidden_size), jnp.float32, -bound, bound)
    b1 = jax.random.uniform(k2, (hidden_size,), jnp.float32, -bound, bound)
    # LayerNorm(H): affine init weight=1, bias=0
    ln_w = jnp.ones((hidden_size,), jnp.float32)
    ln_b = jnp.zeros((hidden_size,), jnp.float32)
    # Linear(H, 1): weight as a length-H vector, scalar bias
    w2 = jax.random.uniform(k3, (hidden_size,), jnp.float32, -bound, bound)
    b2 = jax.random.uniform(k4, (1,), jnp.float32, -bound, bound)
    return (w1, b1, ln_w, ln_b, w2, b2)


def attention_pooling_ref(x, mask, params):
    """Pure-JAX f32 reference mirroring the PyTorch forward."""
    w1, b1, ln_w, ln_b, w2, b2 = params
    h = x @ w1 + b1
    mean = jnp.mean(h, axis=-1, keepdims=True)
    var = jnp.mean((h - mean) ** 2, axis=-1, keepdims=True)
    h = (h - mean) / jnp.sqrt(var + 1e-5) * ln_w + ln_b
    h = 0.5 * h * (1.0 + lax.erf(h / jnp.sqrt(2.0)))
    w = h @ w2[:, None] + b2                          # (B, S, 1)
    w = jnp.where(mask[..., None] == 0, -jnp.inf, w.astype(jnp.float32))
    w = jax.nn.softmax(w, axis=1)
    return jnp.sum(w * x, axis=1)


if __name__ == "__main__":
    B, S, H = 2, 8, 32
    key = jax.random.PRNGKey(0)
    k_x, k_p = jax.random.split(key, 2)

    x = jax.random.normal(k_x, (B, S, H), jnp.float32)
    # mask: batch 0 fully valid, batch 1 has 2 padded tail positions
    mask = jnp.array([[1] * S,
                      [1] * (S - 2) + [0, 0]], dtype=jnp.int32)

    params = init_params(k_p, H)

    out = jax.block_until_ready(attention_pooling(x, mask, params))
    ref = attention_pooling_ref(x, mask, params)

    assert out.shape == (B, H)
    # Tolerance relaxed vs. the f32 reference: the kernel runs the scorer matmul
    # in bf16 and uses an approximate EUP reciprocal for the softmax denominator.
    assert jnp.allclose(out, ref, atol=5e-2, rtol=5e-2), (
        f"max abs err {jnp.max(jnp.abs(out - ref))}")

    print("KERNEL_OK")
</pallas_src>

<mosaic_0001>
module attributes {stable_mosaic.version = 11 : i64} {
  func.func @_attention_pooling_kernel(%arg0: i32, %arg1: memref<2x8x32xf32, #tpu.memory_space<vmem>>, %arg2: memref<2x8xi32, #tpu.memory_space<vmem>>, %arg3: memref<32x32xbf16, #tpu.memory_space<vmem>>, %arg4: memref<1x32xf32, #tpu.memory_space<vmem>>, %arg5: memref<1x32xf32, #tpu.memory_space<vmem>>, %arg6: memref<1x32xf32, #tpu.memory_space<vmem>>, %arg7: memref<1x32xf32, #tpu.memory_space<vmem>>, %arg8: memref<1x1xf32, #tpu.memory_space<smem>>, %arg9: memref<2x32xf32, #tpu.memory_space<vmem>>) attributes {dimension_semantics = [#tpu.dimension_semantics<parallel>], iteration_bounds = array<i64: 1>, scalar_prefetch = 0 : i64, scratch_operands = 0 : i64, tpu.core_type = #tpu.core_type<tc>, window_params = [{transform_indices = @transform_0, window_bounds = array<i64: 2, 8, 32>}, {transform_indices = @transform_1, window_bounds = array<i64: 2, 8>}, {pipeline_mode = #tpu.pipeline_mode<synchronous>, transform_indices = @transform_2, window_bounds = array<i64: 32, 32>}, {pipeline_mode = #tpu.pipeline_mode<synchronous>, transform_indices = @transform_3, window_bounds = array<i64: 1, 32>}, {pipeline_mode = #tpu.pipeline_mode<synchronous>, transform_indices = @transform_4, window_bounds = array<i64: 1, 32>}, {pipeline_mode = #tpu.pipeline_mode<synchronous>, transform_indices = @transform_5, window_bounds = array<i64: 1, 32>}, {pipeline_mode = #tpu.pipeline_mode<synchronous>, transform_indices = @transform_6, window_bounds = array<i64: 1, 32>}, {transform_indices = @transform_7, window_bounds = array<i64: 1, 1>}, {transform_indices = @transform_8, window_bounds = array<i64: 2, 32>}]} {
    %c0 = arith.constant 0 : index
    %c0_0 = arith.constant 0 : index
    %c0_1 = arith.constant 0 : index
    %0 = vector.load %arg1[%c0, %c0_0, %c0_1] : memref<2x8x32xf32, #tpu.memory_space<vmem>>, vector<2x8x32xf32>
    %1 = vector.shape_cast %0 : vector<2x8x32xf32> to vector<16x32xf32>
    %2 = arith.truncf %1 : vector<16x32xf32> to vector<16x32xbf16>
    %c0_2 = arith.constant 0 : index
    %c0_3 = arith.constant 0 : index
    %3 = vector.load %arg3[%c0_2, %c0_3] : memref<32x32xbf16, #tpu.memory_space<vmem>>, vector<32x32xbf16>
    %cst = arith.constant dense<0.000000e+00> : vector<16x32xf32>
    %4 = tpu.matmul %2, %3, %cst {dimension_numbers = #tpu.dot_dimension_numbers<[1], [0], [0], [1], [0, 0, 1, 1], [], []>} : vector<16x32xbf16>, vector<32x32xbf16>, vector<16x32xf32> -> vector<16x32xf32>
    %c0_4 = arith.constant 0 : index
    %c0_5 = arith.constant 0 : index
    %5 = vector.load %arg4[%c0_4, %c0_5] : memref<1x32xf32, #tpu.memory_space<vmem>>, vector<1x32xf32>
    %6 = vector.broadcast %5 : vector<1x32xf32> to vector<16x32xf32>
    %7 = arith.addf %4, %6 : vector<16x32xf32>
    %cst_6 = arith.constant dense<0.000000e+00> : vector<16xf32>
    %8 = vector.multi_reduction <add>, %7, %cst_6 [1] : vector<16x32xf32> to vector<16xf32>
    %9 = vector.shape_cast %8 : vector<16xf32> to vector<16x1xf32>
    %cst_7 = arith.constant 3.200000e+01 : f32
    %10 = vector.broadcast %cst_7 : f32 to vector<16x1xf32>
    %11 = arith.divf %9, %10 : vector<16x1xf32>
    %12 = vector.broadcast %11 : vector<16x1xf32> to vector<16x32xf32>
    %13 = arith.subf %7, %12 : vector<16x32xf32>
    %14 = arith.mulf %13, %13 : vector<16x32xf32>
    %cst_8 = arith.constant dense<0.000000e+00> : vector<16xf32>
    %15 = vector.multi_reduction <add>, %14, %cst_8 [1] : vector<16x32xf32> to vector<16xf32>
    %16 = vector.shape_cast %15 : vector<16xf32> to vector<16x1xf32>
    %cst_9 = arith.constant 3.200000e+01 : f32
    %17 = vector.broadcast %cst_9 : f32 to vector<16x1xf32>
    %18 = arith.divf %16, %17 : vector<16x1xf32>
    %cst_10 = arith.constant 9.99999974E-6 : f32
    %19 = vector.broadcast %cst_10 : f32 to vector<16x1xf32>
    %20 = arith.addf %18, %19 : vector<16x1xf32>
    %21 = math.rsqrt %20 : vector<16x1xf32>
    %22 = vector.broadcast %21 : vector<16x1xf32> to vector<16x32xf32>
    %23 = arith.mulf %13, %22 : vector<16x32xf32>
    %c0_11 = arith.constant 0 : index
    %c0_12 = arith.constant 0 : index
    %24 = vector.load %arg5[%c0_11, %c0_12] : memref<1x32xf32, #tpu.memory_space<vmem>>, vector<1x32xf32>
    %25 = vector.broadcast %24 : vector<1x32xf32> to vector<16x32xf32>
    %26 = arith.mulf %23, %25 : vector<16x32xf32>
    %c0_13 = arith.constant 0 : index
    %c0_14 = arith.constant 0 : index
    %27 = vector.load %arg6[%c0_13, %c0_14] : memref<1x32xf32, #tpu.memory_space<vmem>>, vector<1x32xf32>
    %28 = vector.broadcast %27 : vector<1x32xf32> to vector<16x32xf32>
    %29 = arith.addf %26, %28 : vector<16x32xf32>
    %cst_15 = arith.constant 5.000000e-01 : f32
    %30 = vector.broadcast %cst_15 : f32 to vector<16x32xf32>
    %31 = arith.mulf %30, %29 : vector<16x32xf32>
    %cst_16 = arith.constant 0.707106769 : f32
    %32 = vector.broadcast %cst_16 : f32 to vector<16x32xf32>
    %33 = arith.mulf %29, %32 : vector<16x32xf32>
    %34 = math.erf %33 : vector<16x32xf32>
    %cst_17 = arith.constant 1.000000e+00 : f32
    %35 = vector.broadcast %cst_17 : f32 to vector<16x32xf32>
    %36 = arith.addf %35, %34 : vector<16x32xf32>
    %37 = arith.mulf %31, %36 : vector<16x32xf32>
    %c0_18 = arith.constant 0 : index
    %c0_19 = arith.constant 0 : index
    %38 = vector.load %arg7[%c0_18, %c0_19] : memref<1x32xf32, #tpu.memory_space<vmem>>, vector<1x32xf32>
    %39 = vector.shape_cast %38 : vector<1x32xf32> to vector<1x1x32xf32>
    %40 = vector.shape_cast %37 : vector<16x32xf32> to vector<2x8x32xf32>
    %41 = vector.broadcast %39 : vector<1x1x32xf32> to vector<2x8x32xf32>
    %42 = arith.mulf %40, %41 : vector<2x8x32xf32>
    %cst_20 = arith.constant dense<0.000000e+00> : vector<2x8xf32>
    %43 = vector.multi_reduction <add>, %42, %cst_20 [2] : vector<2x8x32xf32> to vector<2x8xf32>
    %c0_21 = arith.constant 0 : index
    %c0_22 = arith.constant 0 : index
    %44 = memref.load %arg8[%c0_21, %c0_22] : memref<1x1xf32, #tpu.memory_space<smem>>
    %45 = vector.broadcast %44 : f32 to vector<2x8xf32>
    %46 = arith.addf %43, %45 : vector<2x8xf32>
    %c0_23 = arith.constant 0 : index
    %c0_24 = arith.constant 0 : index
    %47 = vector.load %arg2[%c0_23, %c0_24] : memref<2x8xi32, #tpu.memory_space<vmem>>, vector<2x8xi32>
    %c0_i32 = arith.constant 0 : i32
    %48 = vector.broadcast %c0_i32 : i32 to vector<2x8xi32>
    %49 = arith.cmpi eq, %47, %48 : vector<2x8xi32>
    %cst_25 = arith.constant 0xFF800000 : f32
    %50 = vector.broadcast %cst_25 : f32 to vector<2x8xf32>
    %51 = arith.select %49, %50, %46 : vector<2x8xi1>, vector<2x8xf32>
    %cst_26 = arith.constant dense<0xFF800000> : vector<2xf32>
    %52 = vector.multi_reduction <maximumf>, %51, %cst_26 [1] : vector<2x8xf32> to vector<2xf32>
    %53 = vector.shape_cast %52 : vector<2xf32> to vector<2x1xf32>
    %54 = vector.broadcast %53 : vector<2x1xf32> to vector<2x8xf32>
    %55 = arith.subf %51, %54 : vector<2x8xf32>
    %56 = math.exp %55 : vector<2x8xf32>
    %cst_27 = arith.constant dense<0.000000e+00> : vector<2xf32>
    %57 = vector.multi_reduction <add>, %56, %cst_27 [1] : vector<2x8xf32> to vector<2xf32>
    %58 = vector.shape_cast %57 : vector<2xf32> to vector<2x1xf32>
    %59 = tpu.reciprocal %58 {approx = true} : vector<2x1xf32> -> vector<2x1xf32>
    %60 = vector.broadcast %59 : vector<2x1xf32> to vector<2x8xf32>
    %61 = arith.mulf %56, %60 : vector<2x8xf32>
    %62 = vector.shape_cast %61 : vector<2x8xf32> to vector<2x1x8xf32>
    "tpu.trace_start"() <{level = 10 : i32, message = "bqs,bsh->bqh"}> : () -> ()
    %cst_28 = arith.constant dense<0.000000e+00> : vector<2x1x32xf32>
    %63 = tpu.matmul %62, %0, %cst_28 {dimension_numbers = #tpu.dot_dimension_numbers<[2], [1], [1], [2], [0, 0, 0, 1, 1, 2], [0], [0]>} : vector<2x1x8xf32>, vector<2x8x32xf32>, vector<2x1x32xf32> -> vector<2x1x32xf32>
    "tpu.trace_stop"() : () -> ()
    %64 = vector.shape_cast %63 : vector<2x1x32xf32> to vector<2x32xf32>
    %c0_29 = arith.constant 0 : index
    %c0_30 = arith.constant 0 : index
    %65 = vector.load %arg9[%c0_29, %c0_30] : memref<2x32xf32, #tpu.memory_space<vmem>>, vector<2x32xf32>
    tpu.vector_store %arg9[%c0_29, %c0_30], %64 {strides = array<i32>} : memref<2x32xf32, #tpu.memory_space<vmem>>, vector<2x32xf32>,
    return
  }
  func.func @transform_0(%arg0: i32) -> (i32, i32, i32) {
    %c0_i32 = arith.constant 0 : i32
    %c0_i32_0 = arith.constant 0 : i32
    %c0_i32_1 = arith.constant 0 : i32
    return %arg0, %c0_i32, %c0_i32_0 : i32, i32, i32
  }
  func.func @transform_1(%arg0: i32) -> (i32, i32) {
    %c0_i32 = arith.constant 0 : i32
    %c0_i32_0 = arith.constant 0 : i32
    return %arg0, %c0_i32 : i32, i32
  }
  func.func @transform_2(%arg0: i32) -> (i32, i32) {
    %c0_i32 = arith.constant 0 : i32
    %c0_i32_0 = arith.constant 0 : i32
    %c0_i32_1 = arith.constant 0 : i32
    return %c0_i32, %c0_i32_0 : i32, i32
  }
  func.func @transform_3(%arg0: i32) -> (i32, i32) {
    %c0_i32 = arith.constant 0 : i32
    %c0_i32_0 = arith.constant 0 : i32
    %c0_i32_1 = arith.constant 0 : i32
    return %c0_i32, %c0_i32_0 : i32, i32
  }
  func.func @transform_4(%arg0: i32) -> (i32, i32) {
    %c0_i32 = arith.constant 0 : i32
    %c0_i32_0 = arith.constant 0 : i32
    %c0_i32_1 = arith.constant 0 : i32
    return %c0_i32, %c0_i32_0 : i32, i32
  }
  func.func @transform_5(%arg0: i32) -> (i32, i32) {
    %c0_i32 = arith.constant 0 : i32
    %c0_i32_0 = arith.constant 0 : i32
    %c0_i32_1 = arith.constant 0 : i32
    return %c0_i32, %c0_i32_0 : i32, i32
  }
  func.func @transform_6(%arg0: i32) -> (i32, i32) {
    %c0_i32 = arith.constant 0 : i32
    %c0_i32_0 = arith.constant 0 : i32
    %c0_i32_1 = arith.constant 0 : i32
    return %c0_i32, %c0_i32_0 : i32, i32
  }
  func.func @transform_7(%arg0: i32) -> (i32, i32) {
    %c0_i32 = arith.constant 0 : i32
    %c0_i32_0 = arith.constant 0 : i32
    %c0_i32_1 = arith.constant 0 : i32
    return %c0_i32, %c0_i32_0 : i32, i32
  }
  func.func @transform_8(%arg0: i32) -> (i32, i32) {
    %c0_i32 = arith.constant 0 : i32
    %c0_i32_0 = arith.constant 0 : i32
    return %arg0, %c0_i32 : i32, i32
  }
}

</mosaic_0001>

<llo_original>
// kernel: tpu_custom_call.1
$region0: #{tpu_custom_call.1}
  #allocation0 [shape = 'u32[]', space=smem, size = 0x4, offset = 0x4, fixed_abs, tag = 'smem constant byte address 0x4 - core index']
  #allocation1 [shape = 'u32[72,128]{1,0:T(1,128)}', space=vmem, size = 0x9000, scoped, tag = 'internal scratch']
  #allocation2 [shape = 'f32[1,1]{1,0:T(1,128)S(6)}', space=smem, size = 0x200, scoped, tag = 'scoped memory for tpu_custom_call.1']
  %s0 = inlined_call_operand.hbm [shape: f32[2,8,32], index: 0, kind: input, shape index: {}]
  %s1 = inlined_call_operand.vmem [shape: s32[2,8], index: 1, kind: input, shape index: {}]
  %s2 = inlined_call_operand.hbm [shape: bf16[32,32], index: 2, kind: input, shape index: {}]
  %s3 = inlined_call_operand.vmem [shape: f32[1,32], index: 3, kind: input, shape index: {}]
  %s4 = inlined_call_operand.vmem [shape: f32[1,32], index: 4, kind: input, shape index: {}]
  %s5 = inlined_call_operand.vmem [shape: f32[1,32], index: 5, kind: input, shape index: {}]
  %s6 = inlined_call_operand.vmem [shape: f32[1,32], index: 6, kind: input, shape index: {}]
  %s7 = inlined_call_operand.<no memory space> [shape: f32[1,1], index: 7, kind: input, shape index: {}]
  %s8 = inlined_call_operand.hbm [shape: f32[2,32], index: 8, kind: output, shape index: {}]
  %s9 = sld [smem:[#allocation0]]
  $region50: #{tpu_custom_call.1} parent=0
    _
  %s11 = ssub.s32 1, %s9
  %s12 = scalar_select 0, %s11, %s9
  %13 = sst [smem:[#allocation2]] %s7
  $region1: #{tpu_custom_call.1} parent=0
    #allocation3 [shape = 'u8[8192]{0}', space=vmem, size = 0x2000, scoped, tag = 'input window, operand 0, single buffered']
    #allocation4 [shape = 's32[1]{0}', space=sflag, size = 0x4, scoped, tag = 'scoped memory for tpu_custom_call.1']
    #allocation5 [shape = 's32[1]{0}', space=sflag, size = 0x4, scoped, tag = 'scoped memory for tpu_custom_call.1']
    #allocation6 [shape = 'u8[8192]{0}', space=vmem, size = 0x2000, scoped, tag = 'input window, operand 2, single buffered']
    #allocation7 [shape = 's32[1]{0}', space=sflag, size = 0x4, scoped, tag = 'scoped memory for tpu_custom_call.1']
    #allocation8 [shape = 'u8[1024]{0}', space=vmem, size = 0x400, scoped, tag = 'output window, operand 0, single buffered']
    %14 = vsyncpa [#allocation4], 0
    %15 = vsyncpa [#allocation7], 0
    %16 = vsyncpa [#allocation5], 0
    // Predicated region
    $region2: #{tpu_custom_call.1} parent=1 // pred_check
      _
    $region3: #{tpu_custom_call.1} parent=1 // pred_check_branch
      %18 = sbr.rel (0) target = $region5
    $region4: #{tpu_custom_call.1} parent=1 // pred_region
      %20 = vsyncadd [#allocation4], 0
      %s21 = sshll.u32 %s0, 4
      %s22 = int_to_ptr.hbm [resolvable:$true] %s21
      %s23 = sshll.u32 [#allocation3], 4
      %s24 = int_to_ptr.vmem [resolvable:$true] %s23
      %29 = dma.hbm_to_vmem [thread:$0]  %s22, 256, %s24, [#allocation4], 128, 128, 8
    $region5: #{tpu_custom_call.1} parent=1 // pred_fallthru
      _
    // Predicated region
    $region6: #{tpu_custom_call.1} parent=1 // pred_check
      _
    $region7: #{tpu_custom_call.1} parent=1 // pred_check_branch
      %31 = sbr.rel (0) target = $region9
    $region8: #{tpu_custom_call.1} parent=1 // pred_region
      _
    $region9: #{tpu_custom_call.1} parent=1 // pred_fallthru
      _
    // Predicated region
    $region10: #{tpu_custom_call.1} parent=1 // pred_check
      _
    $region11: #{tpu_custom_call.1} parent=1 // pred_check_branch
      %33 = sbr.rel (0) target = $region13
    $region12: #{tpu_custom_call.1} parent=1 // pred_region
      %35 = vsyncadd [#allocation7], 0
      %s36 = sshll.u32 %s2, 4
      %s37 = int_to_ptr.hbm [resolvable:$true] %s36
      %s38 = sshll.u32 [#allocation6], 4
      %s39 = int_to_ptr.vmem [resolvable:$true] %s38
      %44 = dma.hbm_to_vmem [thread:$0]  %s37, 256, %s39, [#allocation7], 64, 64, 4
    $region13: #{tpu_custom_call.1} parent=1 // pred_fallthru
      _
    // Predicated region
    $region14: #{tpu_custom_call.1} parent=1 // pred_check
      _
    $region15: #{tpu_custom_call.1} parent=1 // pred_check_branch
      %46 = sbr.rel (0) target = $region17
    $region16: #{tpu_custom_call.1} parent=1 // pred_region
      _
    $region17: #{tpu_custom_call.1} parent=1 // pred_fallthru
      _
    // Predicated region
    $region18: #{tpu_custom_call.1} parent=1 // pred_check
      _
    $region19: #{tpu_custom_call.1} parent=1 // pred_check_branch
      %48 = sbr.rel (0) target = $region21
    $region20: #{tpu_custom_call.1} parent=1 // pred_region
      _
    $region21: #{tpu_custom_call.1} parent=1 // pred_fallthru
      _
    // Predicated region
    $region22: #{tpu_custom_call.1} parent=1 // pred_check
      _
    $region23: #{tpu_custom_call.1} parent=1 // pred_check_branch
      %50 = sbr.rel (0) target = $region25
    $region24: #{tpu_custom_call.1} parent=1 // pred_region
      _
    $region25: #{tpu_custom_call.1} parent=1 // pred_fallthru
      _
    // Predicated region
    $region26: #{tpu_custom_call.1} parent=1 // pred_check
      _
    $region27: #{tpu_custom_call.1} parent=1 // pred_check_branch
      %52 = sbr.rel (0) target = $region29
    $region28: #{tpu_custom_call.1} parent=1 // pred_region
      _
    $region29: #{tpu_custom_call.1} parent=1 // pred_fallthru
      _
    // Predicated region
    $region30: #{tpu_custom_call.1} parent=1 // pred_check
      _
    $region31: #{tpu_custom_call.1} parent=1 // pred_check_branch
      %54 = sbr.rel (0) target = $region33
    $region32: #{tpu_custom_call.1} parent=1 // pred_region
      _
    $region33: #{tpu_custom_call.1} parent=1 // pred_fallthru
      _
    // Predicated region
    $region34: #{tpu_custom_call.1} parent=1 // pred_check
      _
    $region35: #{tpu_custom_call.1} parent=1 // pred_check_branch
      %56 = sbr.rel (0) target = $region37
    $region36: #{tpu_custom_call.1} parent=1 // pred_region
      %58 = dma.done [#allocation4], 256
    $region37: #{tpu_custom_call.1} parent=1 // pred_fallthru
      _
    // Predicated region
    $region38: #{tpu_custom_call.1} parent=1 // pred_check
      _
    $region39: #{tpu_custom_call.1} parent=1 // pred_check_branch
      %60 = sbr.rel (0) target = $region41
    $region40: #{tpu_custom_call.1} parent=1 // pred_region
      %62 = dma.done [#allocation7], 256
    $region41: #{tpu_custom_call.1} parent=1 // pred_fallthru
      _
    %v64 = vld [vmem:[#allocation3] sm:$0xff]
    %v65 = vld [vmem:[#allocation3 + $0x8] sm:$0xff]
    %v66 = vpack.c.bf16 %v65, %v64
    %v67 = vld [vmem:[#allocation6] sm:$0xf]
    %v68 = vld [vmem:[#allocation6 + $0x4] sm:$0xf]
    %v69 = vld [vmem:[#allocation6 + $0x8] sm:$0xf]
    %v70 = vld [vmem:[#allocation6 + $0xc] sm:$0xf]
    %v71 = vld [vmem:[%s3] sm:$0x1]
    %v73 = vperm.slane %v71, 0
    %v79 = vunpack.c.l.b16 %v67
    %v80 = vunpack.c.l.b16 %v68
    %v81 = vunpack.c.l.b16 %v69
    %v82 = vunpack.c.l.b16 %v70
    %v83 = vpack.c.b16 %v80, %v79
    %v84 = vpack.c.b16 %v82, %v81
    %vm87 = vcmask 261120
    %v89 = vsel %vm87, %v66, 0
    %91 = vmatpush.bf16.msra.mxu0 0
    %92 = vmatpush.bf16.msra.mxu0 0
    %93 = vmatpush.bf16.msra.mxu0 0
    %94 = vmatpush.bf16.msra.mxu0 0
    %95 = vmatpush.bf16.msra.mxu0 0
    %96 = vmatpush.bf16.msra.mxu0 0
    %97 = vmatpush.bf16.msra.mxu0 %v84
    %98 = vmatpush.bf16.msra.mxu0 %v83
    %99 = vmatmul.bf16.gmra.mxu0 %v89
    %v100 = vpop.f32.mrf.mxu0
    %v101 = vadd.f32 %v73, %v100
    %v102 = vpop.f32.mrf.mxu0
    %v103 = vadd.f32 %v73, %v102
    %104 = vdwg.mxu0
    %v105 = vsel %vm87, %v101, 0.0
    %106 = vadd.xlane.f32.xlu0 %v105
    %v107 = vpop.xlane.xlu0 %106
    %v108 = vsel %vm87, %v103, 0.0
    %109 = vadd.xlane.f32.xlu0 %v108
    %v110 = vpop.xlane.xlu0 %109
    %v111 = vrcp.pop 32.0
    %v112 = vmul.f32 32.0, %v111
    %v113 = vsub.f32 1.0, %v112
    %v114 = vmul.f32 %v111, %v113
    %v115 = vadd.f32 %v111, %v114
    %vm116 = vweird.f32 %v111
    %v117 = vsel %vm116, %v111, %v115
    %v118 = vmul.f32 %v107, %v117
    %v119 = vmul.f32 %v110, %v117
    %v120 = vsub.f32 %v101, %v118
    %v121 = vsub.f32 %v103, %v119
    %v122 = vmul.f32 %v120, %v120
    %v123 = vmul.f32 %v121, %v121
    %v124 = vsel %vm87, %v122, 0.0
    %125 = vadd.xlane.f32.xlu0 %v124
    %v126 = vpop.xlane.xlu0 %125
    %v127 = vsel %vm87, %v123, 0.0
    %128 = vadd.xlane.f32.xlu0 %v127
    %v129 = vpop.xlane.xlu0 %128
    %v130 = vmul.f32 %v126, %v117
    %v131 = vmul.f32 %v129, %v117
    %v132 = vadd.f32 %v130, 1e-05
    %v133 = vadd.f32 %v131, 1e-05
    %v134 = vrsqrt.pop %v132
    %v135 = vmul.f32 %v134, %v132
    %v136 = vmul.f32 %v135, %v134
    %v137 = vmul.f32 0.5, %v136
    %v138 = vsub.f32 1.5, %v137
    %v139 = vmul.f32 %v134, %v138
    %vm140 = vweird.f32 %v132
    %vm141 = vweird.f32 %v134
    %vm142 = vmor %vm140, %vm141
    %v143 = vsel %vm142, %v134, %v139
    %v144 = vrsqrt.pop %v133
    %v145 = vmul.f32 %v144, %v133
    %v146 = vmul.f32 %v145, %v144
    %v147 = vmul.f32 0.5, %v146
    %v148 = vsub.f32 1.5, %v147
    %v149 = vmul.f32 %v144, %v148
    %vm150 = vweird.f32 %v133
    %vm151 = vweird.f32 %v144
    %vm152 = vmor %vm150, %vm151
    %v153 = vsel %vm152, %v144, %v149
    %v154 = vmul.f32 %v120, %v143
    %v155 = vmul.f32 %v121, %v153
    %v156 = vld [vmem:[%s4] sm:$0x1]
    %v158 = vperm.slane %v156, 0
    %v160 = vmul.f32 %v154, %v158
    %v161 = vmul.f32 %v155, %v158
    %v162 = vld [vmem:[%s5] sm:$0x1]
    %v164 = vperm.slane %v162, 0
    %v166 = vadd.f32 %v160, %v164
    %v167 = vadd.f32 %v161, %v164
    %v168 = vmul.f32 %v166, 0.5
    %v169 = vmul.f32 %v167, 0.5
    %v170 = vmul.f32 %v166, 0.70710677
    %v171 = vmul.f32 %v167, 0.70710677
    %v172 = vmul.f32 %v170, %v170
    %v173 = vmin.f32 16.0, %v172
    %v174 = vmul.f32 %v173, 2.1237322e-06
    %v175 = vadd.f32 %v174, 0.00028619796
    %v176 = vmul.f32 %v173, %v175
    %v177 = vadd.f32 %v176, 0.0036580483
    %v178 = vmul.f32 %v173, %v177
    %v179 = vadd.f32 %v178, 0.05243302
    %v180 = vmul.f32 %v173, %v179
    %v181 = vadd.f32 %v180, 0.18741608
    %v182 = vmul.f32 %v173, %v181
    %v183 = vadd.f32 %v182, 1.1283791
    %v184 = vmul.f32 %v170, %v183
    %v185 = vmul.f32 %v173, 3.8918573e-05
    %v186 = vadd.f32 %v185, 0.001143296
    %v187 = vmul.f32 %v173, %v186
    %v188 = vadd.f32 %v187, 0.014752088
    %v189 = vmul.f32 %v173, %v188
    %v190 = vadd.f32 %v189, 0.112945676
    %v191 = vmul.f32 %v173, %v190
    %v192 = vadd.f32 %v191, 0.4994258
    %v193 = vmul.f32 %v173, %v192
    %v194 = vadd.f32 %v193, 1.0
    %v195 = vrcp.pop %v194
    %v196 = vmul.f32 %v194, %v195
    %v197 = vsub.f32 1.0, %v196
    %v198 = vmul.f32 %v195, %v197
    %v199 = vadd.f32 %v195, %v198
    %vm200 = vweird.f32 %v194
    %vm201 = vweird.f32 %v195
    %vm202 = vmor %vm200, %vm201
    %v203 = vsel %vm202, %v195, %v199
    %v204 = vand.u32 2147483647, %v194
    %vm205 = vcmp.eq.f32.partialorder %v204, 8.507059e+37
    %v206 = vand.u32 %v194, 2147483648
    %v207 = vor.u32 1.1754944e-38, %v206
    %v208 = vsel %vm205, %v207, %v203
    %v209 = vmul.f32 %v184, %v208
    %v210 = vmin.f32 %v209, 1.0
    %v211 = vmax.f32 %v210, -1.0
    %v212 = vmul.f32 %v171, %v171
    %v213 = vmin.f32 16.0, %v212
    %v214 = vmul.f32 %v213, 2.1237322e-06
    %v215 = vadd.f32 %v214, 0.00028619796
    %v216 = vmul.f32 %v213, %v215
    %v217 = vadd.f32 %v216, 0.0036580483
    %v218 = vmul.f32 %v213, %v217
    %v219 = vadd.f32 %v218, 0.05243302
    %v220 = vmul.f32 %v213, %v219
    %v221 = vadd.f32 %v220, 0.18741608
    %v222 = vmul.f32 %v213, %v221
    %v223 = vadd.f32 %v222, 1.1283791
    %v224 = vmul.f32 %v171, %v223
    %v225 = vmul.f32 %v213, 3.8918573e-05
    %v226 = vadd.f32 %v225, 0.001143296
    %v227 = vmul.f32 %v213, %v226
    %v228 = vadd.f32 %v227, 0.014752088
    %v229 = vmul.f32 %v213, %v228
    %v230 = vadd.f32 %v229, 0.112945676
    %v231 = vmul.f32 %v213, %v230
    %v232 = vadd.f32 %v231, 0.4994258
    %v233 = vmul.f32 %v213, %v232
    %v234 = vadd.f32 %v233, 1.0
    %v235 = vrcp.pop %v234
    %v236 = vmul.f32 %v234, %v235
    %v237 = vsub.f32 1.0, %v236
    %v238 = vmul.f32 %v235, %v237
    %v239 = vadd.f32 %v235, %v238
    %vm240 = vweird.f32 %v234
    %vm241 = vweird.f32 %v235
    %vm242 = vmor %vm240, %vm241
    %v243 = vsel %vm242, %v235, %v239
    %v244 = vand.u32 2147483647, %v234
    %vm245 = vcmp.eq.f32.partialorder %v244, 8.507059e+37
    %v246 = vand.u32 %v234, 2147483648
    %v247 = vor.u32 1.1754944e-38, %v246
    %v248 = vsel %vm245, %v247, %v243
    %v249 = vmul.f32 %v224, %v248
    %v250 = vmin.f32 %v249, 1.0
    %v251 = vmax.f32 %v250, -1.0
    %v252 = vadd.f32 %v211, 1.0
    %v253 = vadd.f32 %v251, 1.0
    %v254 = vmul.f32 %v168, %v252
    %v255 = vmul.f32 %v169, %v253
    %v256 = vld [vmem:[%s6] sm:$0x1]
    %v258 = vperm.slane %v256, 0
    %v260 = vmul.f32 %v254, %v258
    %v261 = vmul.f32 %v255, %v258
    %v262 = vsel %vm87, %v260, 0.0
    %263 = vadd.xlane.f32.xlu0 %v262
    %v264 = vpop.xlane.xlu0 %263
    %v265 = vsel %vm87, %v261, 0.0
    %266 = vadd.xlane.f32.xlu0 %v265
    %v267 = vpop.xlane.xlu0 %266
    %s268 = sld [smem:[#allocation2]]
    %v269 = vstv %s268
    %v270 = vadd.f32 %v264, %v269
    %v271 = vadd.f32 %v267, %v269
    %v272 = vld [vmem:[%s1] sm:$0x3]
    %vm273 = vcmp.eq.s32.totalorder %v272, 0
    %v276 = vlaneseq
    %v277 = vand.u32 %v276, 127
    %v278 = vperm.slane %v270, %v277
    %v279 = vperm.slane %v271, %v277
    %vm280 = vcmask 1041409
    %v281 = vsel %vm280, %v279, %v278
    %v283 = vsel %vm273, -inf, %v281
    %vm284 = vcmask 58368
    %v285 = vsel %vm284, %v283, -inf
    %286 = vmax.xlane.f32.xlu0 %v285
    %v287 = vpop.xlane.xlu0 %286
    %v288 = vsub.f32 %v283, %v287
    %v289 = vmul.f32 %v288, 1.442695
    %v290 = vpow.pop %v289
    %v291 = vsel %vm284, %v290, 0.0
    %292 = vadd.xlane.f32.xlu0 %v291
    %v293 = vpop.xlane.xlu0 %292
    %v294 = vrcp.pop %v293
    %v295 = vmul.f32 %v290, %v294
    %v297 = vrot.slane %v295, 1
    %vm298 = vcmask 64512
    %v299 = vsel %vm298, %v295, 0
    %301 = vmatpush.msra.mxu0 0.0
    %302 = vmatpush.msra.mxu0 0.0
    %303 = vmatpush.msra.mxu0 0.0
    %304 = vmatpush.msra.mxu0 0.0
    %305 = vmatpush.msra.mxu0 0.0
    %306 = vmatpush.msra.mxu0 0.0
    %307 = vmatpush.msra.mxu0 0.0
    %308 = vmatpush.msra.mxu0 0.0
    %309 = vmatpush.msra.mxu0 0.0
    %310 = vmatpush.msra.mxu0 0.0
    %311 = vmatpush.msra.mxu0 0.0
    %312 = vmatpush.msra.mxu0 0.0
    %313 = vmatpush.msra.mxu0 0.0
    %314 = vmatpush.msra.mxu0 0.0
    %315 = vmatpush.msra.mxu0 0.0
    %316 = vmatpush.msra.mxu0 %v64
    %317 = vmatmul.f32.gmra.mxu0 %v299
    %v318 = vpop.f32.mrf.mxu0
    %v319 = vadd.f32 0.0, %v318
    %320 = vdwg.mxu0
    %v321 = vsel %vm298, %v297, 0
    %323 = vmatpush.msra.mxu0 0.0
    %324 = vmatpush.msra.mxu0 0.0
    %325 = vmatpush.msra.mxu0 0.0
    %326 = vmatpush.msra.mxu0 0.0
    %327 = vmatpush.msra.mxu0 0.0
    %328 = vmatpush.msra.mxu0 0.0
    %329 = vmatpush.msra.mxu0 0.0
    %330 = vmatpush.msra.mxu0 0.0
    %331 = vmatpush.msra.mxu0 0.0
    %332 = vmatpush.msra.mxu0 0.0
    %333 = vmatpush.msra.mxu0 0.0
    %334 = vmatpush.msra.mxu0 0.0
    %335 = vmatpush.msra.mxu0 0.0
    %336 = vmatpush.msra.mxu0 0.0
    %337 = vmatpush.msra.mxu0 0.0
    %338 = vmatpush.msra.mxu0 %v65
    %339 = vmatmul.f32.gmra.mxu0 %v321
    %v340 = vpop.f32.mrf.mxu0
    %v341 = vadd.f32 0.0, %v340
    %342 = vdwg.mxu0
    %v345 = vrot.slane %v341, 7
    %v346 = vsel %vm280, %v345, %v319
    %vm348 = vcmask 254976
    %349 = vst.msk [vmem:[#allocation8] sm:$0x3] %vm348, %v346
    // Predicated region
    $region42: #{tpu_custom_call.1} parent=1 // pred_check
      _
    $region43: #{tpu_custom_call.1} parent=1 // pred_check_branch
      %351 = sbr.rel (0) target = $region45
    $region44: #{tpu_custom_call.1} parent=1 // pred_region
      %353 = vsyncadd [#allocation5], 0
      %s355 = sshll.u32 [#allocation8], 4
      %s356 = int_to_ptr.vmem [resolvable:$true] %s355
      %s357 = sshll.u32 %s8, 4
      %s358 = int_to_ptr.hbm [resolvable:$true] %s357
      %360 = dma.vmem_to_hbm [thread:$0]  %s356, 32, %s358, [#allocation5]
    $region45: #{tpu_custom_call.1} parent=1 // pred_fallthru
      _
    // Predicated region
    $region46: #{tpu_custom_call.1} parent=1 // pred_check
      _
    $region47: #{tpu_custom_call.1} parent=1 // pred_check_branch
      %362 = sbr.rel (0) target = $region49
    $region48: #{tpu_custom_call.1} parent=1 // pred_region
      %364 = dma.done [#allocation5], 32
    $region49: #{tpu_custom_call.1} parent=1 // pred_fallthru
      _
    %365 = vsyncpa [#allocation4], 1
    %366 = vsyncpa [#allocation7], 1
    %367 = vsyncpa [#allocation5], 1

</llo_original>
